<compile_context>
chip_gen: v7x
topology: tpu7x:2x2x1
jax: 0.10.0
libtpu: 0.0.40
codegen_flags: <defaults>
</compile_context>

<pallas_src>
import jax
import jax.numpy as jnp
from jax.experimental import pallas as pl
from jax.experimental.pallas import tpu as pltpu


def _round_up(a, m):
    return ((a + m - 1) // m) * m


def masked_softmax_kernel(x_ref, mask_ref, o_ref):
    x = x_ref[...].astype(jnp.float32)
    keep = mask_ref[...] == 1                      # exact PyTorch `mask == 1`
    masked_x = jnp.where(keep, x, -jnp.inf)        # scalar -inf, no full-tile fill

    # Numerically-stable softmax along the last axis (PyTorch dim=1).
    row_max = jnp.max(masked_x, axis=-1, keepdims=True)
    exps = jnp.exp(masked_x - row_max)             # all-masked row -> NaN (matches torch)
    denom = jnp.sum(exps, axis=-1, keepdims=True)
    # Exact divide: approx reciprocal perturbed row sums by ~1e-3; exact is
    # still hidden behind the HBM DMA in this memory-bound kernel.
    o_ref[...] = (exps / denom).astype(o_ref.dtype)


def _choose_block_rows(batch, vmem_bytes_per_row, budget):
    """Row-tile size: as big as the VMEM budget allows (amortize ~0.35us/step),
    multiple of 32 sublanes, >= 2 grid steps for v7x megacore when the batch
    allows, and small batch-padding waste."""
    rows_fit = budget // max(vmem_bytes_per_row, 1)
    if rows_fit >= 32:
        rows_fit = (rows_fit // 32) * 32
    else:
        rows_fit = max(8, (rows_fit // 8) * 8)
    # TODO(synk): for rows so wide that even an 8-row stripe exceeds scoped
    # VMEM, fall back to a column-tiled online-softmax (running max/sum).
    if batch <= rows_fit and batch <= 1024:
        # Tiny problem: one step over the exact batch (block == full array
        # dims is always legal), zero padding.
        return batch
    rows = min(rows_fit, max(32, _round_up((batch + 1) // 2, 32)))
    # Shrink (32-row steps) if batch-padding waste would exceed ~10%.
    while rows > 32 and (_round_up(batch, rows) - batch) * 10 > batch:
        rows -= 32
    return rows


def masked_softmax(x, mask, *, block_rows=None, vmem_budget_bytes=None):
    """out = softmax(where(mask == 1, x, -inf), axis=1) for 2-D (batch, N)."""
    assert x.ndim == 2 and mask.shape == x.shape
    B, N = x.shape
    out_dtype = x.dtype

    if vmem_budget_bytes is None:
        # Per buffered set (x + mask + out tiles); double buffering doubles it.
        # 6 MiB/set (~12 MiB total) fits the default scoped VMEM on every
        # generation (v5e 16 MiB, v6e/v7x 32 MiB) without vmem_limit_bytes.
        vmem_budget_bytes = 6 * 1024 * 1024

    # VMEM footprint per row: the lane dim is padded to 128 inside VMEM even
    # though the HBM<->VMEM DMA only moves the real N columns.
    lane_n = _round_up(N, 128)
    vmem_bytes_per_row = (x.dtype.itemsize + mask.dtype.itemsize
                          + jnp.dtype(out_dtype).itemsize) * lane_n

    if block_rows is None:
        block_rows = _choose_block_rows(B, vmem_bytes_per_row, vmem_budget_bytes)

    # Pad the batch only if the row tile does not divide it (padded rows are
    # fully masked -> NaN, sliced off below). The lane dim is never padded.
    B_pad = _round_up(B, block_rows)
    if B_pad != B:
        x_in = jnp.pad(x, ((0, B_pad - B), (0, 0)))
        mask_in = jnp.pad(mask, ((0, B_pad - B), (0, 0)))
    else:
        x_in, mask_in = x, mask

    grid = (B_pad // block_rows,)

    out = pl.pallas_call(
        masked_softmax_kernel,
        out_shape=jax.ShapeDtypeStruct((B_pad, N), out_dtype),
        grid_spec=pltpu.PrefetchScalarGridSpec(
            num_scalar_prefetch=0,
            grid=grid,
            in_specs=[
                pl.BlockSpec((block_rows, N), lambda i: (i, 0)),
                pl.BlockSpec((block_rows, N), lambda i: (i, 0)),
            ],
            out_specs=pl.BlockSpec((block_rows, N), lambda i: (i, 0)),
        ),
        compiler_params=pltpu.CompilerParams(
            dimension_semantics=("parallel",)),
    )(x_in, mask_in)

    return out if B_pad == B else out[:B]


if __name__ == "__main__":
    key = jax.random.PRNGKey(0)
    kx, km, kx2, km2, kx3, km3 = jax.random.split(key, 6)

    # --- Main check: small shapes consistent with the module (batch=8, N=32).
    B, N = 8, 32
    x = jax.random.normal(kx, (B, N), dtype=jnp.float32)
    # Random binary mask; guarantee at least one kept element per row so the
    # output is finite (fully-masked rows would be NaN, same as PyTorch).
    mask = (jax.random.uniform(km, (B, N)) > 0.3).astype(jnp.int32)
    mask = mask.at[:, 0].set(1)

    out = masked_softmax(x, mask)
    jax.block_until_ready(out)

    ref = jax.nn.softmax(jnp.where(mask == 1, x, -jnp.inf), axis=1)
    assert out.shape == ref.shape
    assert jnp.allclose(out, ref, atol=1e-5, rtol=1e-5), "mismatch vs reference"
    assert jnp.all(jnp.where(mask == 0, out, 0.0) == 0.0)
    assert jnp.allclose(out.sum(axis=1), 1.0, atol=1e-5)

    # --- Multi-step grid + ragged N + non-binary mask (checks `== 1` semantics).
    B2, N2 = 96, 160
    x2 = jax.random.normal(kx2, (B2, N2), dtype=jnp.float32)
    m2 = jax.random.randint(km2, (B2, N2), 0, 3)   # values in {0,1,2}
    m2 = m2.at[:, 0].set(1)
    out2 = masked_softmax(x2, m2, block_rows=32)
    jax.block_until_ready(out2)
    ref2 = jax.nn.softmax(jnp.where(m2 == 1, x2, -jnp.inf), axis=1)
    assert jnp.allclose(out2, ref2, atol=1e-5, rtol=1e-5)

    # --- Batch-padding path (B not a multiple of the row tile).
    B3, N3 = 50, 160
    x3 = jax.random.normal(kx3, (B3, N3), dtype=jnp.float32)
    m3 = (jax.random.uniform(km3, (B3, N3)) > 0.5).astype(jnp.int32)
    m3 = m3.at[:, 0].set(1)
    out3 = masked_softmax(x3, m3, block_rows=32)
    jax.block_until_ready(out3)
    ref3 = jax.nn.softmax(jnp.where(m3 == 1, x3, -jnp.inf), axis=1)
    assert out3.shape == (B3, N3)
    assert jnp.allclose(out3, ref3, atol=1e-5, rtol=1e-5)

    print("KERNEL_OK")
</pallas_src>

<mosaic_0001>
module attributes {stable_mosaic.version = 11 : i64} {
  func.func @masked_softmax_kernel(%arg0: i32, %arg1: memref<8x32xf32, #tpu.memory_space<vmem>>, %arg2: memref<8x32xi32, #tpu.memory_space<vmem>>, %arg3: memref<8x32xf32, #tpu.memory_space<vmem>>) attributes {dimension_semantics = [#tpu.dimension_semantics<parallel>], iteration_bounds = array<i64: 1>, scalar_prefetch = 0 : i64, scratch_operands = 0 : i64, tpu.core_type = #tpu.core_type<tc>, window_params = [{transform_indices = @transform_0, window_bounds = array<i64: 8, 32>}, {transform_indices = @transform_1, window_bounds = array<i64: 8, 32>}, {transform_indices = @transform_2, window_bounds = array<i64: 8, 32>}]} {
    %c0 = arith.constant 0 : index
    %c0_0 = arith.constant 0 : index
    %0 = vector.load %arg1[%c0, %c0_0] : memref<8x32xf32, #tpu.memory_space<vmem>>, vector<8x32xf32>
    %c0_1 = arith.constant 0 : index
    %c0_2 = arith.constant 0 : index
    %1 = vector.load %arg2[%c0_1, %c0_2] : memref<8x32xi32, #tpu.memory_space<vmem>>, vector<8x32xi32>
    %c1_i32 = arith.constant 1 : i32
    %2 = vector.broadcast %c1_i32 : i32 to vector<8x32xi32>
    %3 = arith.cmpi eq, %1, %2 : vector<8x32xi32>
    %cst = arith.constant 0xFF800000 : f32
    %4 = vector.broadcast %cst : f32 to vector<8x32xf32>
    %5 = arith.select %3, %0, %4 : vector<8x32xi1>, vector<8x32xf32>
    %cst_3 = arith.constant dense<0xFF800000> : vector<8xf32>
    %6 = vector.multi_reduction <maximumf>, %5, %cst_3 [1] : vector<8x32xf32> to vector<8xf32>
    %7 = vector.shape_cast %6 : vector<8xf32> to vector<8x1xf32>
    %8 = vector.broadcast %7 : vector<8x1xf32> to vector<8x32xf32>
    %9 = arith.subf %5, %8 : vector<8x32xf32>
    %10 = math.exp %9 : vector<8x32xf32>
    %cst_4 = arith.constant dense<0.000000e+00> : vector<8xf32>
    %11 = vector.multi_reduction <add>, %10, %cst_4 [1] : vector<8x32xf32> to vector<8xf32>
    %12 = vector.shape_cast %11 : vector<8xf32> to vector<8x1xf32>
    %13 = vector.broadcast %12 : vector<8x1xf32> to vector<8x32xf32>
    %14 = arith.divf %10, %13 : vector<8x32xf32>
    %c0_5 = arith.constant 0 : index
    %c0_6 = arith.constant 0 : index
    %15 = vector.load %arg3[%c0_5, %c0_6] : memref<8x32xf32, #tpu.memory_space<vmem>>, vector<8x32xf32>
    tpu.vector_store %arg3[%c0_5, %c0_6], %14 {strides = array<i32>} : memref<8x32xf32, #tpu.memory_space<vmem>>, vector<8x32xf32>,
    return
  }
  func.func @transform_0(%arg0: i32) -> (i32, i32) {
    %c0_i32 = arith.constant 0 : i32
    %c0_i32_0 = arith.constant 0 : i32
    return %arg0, %c0_i32 : i32, i32
  }
  func.func @transform_1(%arg0: i32) -> (i32, i32) {
    %c0_i32 = arith.constant 0 : i32
    %c0_i32_0 = arith.constant 0 : i32
    return %arg0, %c0_i32 : i32, i32
  }
  func.func @transform_2(%arg0: i32) -> (i32, i32) {
    %c0_i32 = arith.constant 0 : i32
    %c0_i32_0 = arith.constant 0 : i32
    return %arg0, %c0_i32 : i32, i32
  }
}

</mosaic_0001>

<llo_original>
// kernel: tpu_custom_call.1
$region0: #{tpu_custom_call.1}
  #allocation0 [shape = 'u32[]', space=smem, size = 0x4, offset = 0x4, fixed_abs, tag = 'smem constant byte address 0x4 - core index']
  #allocation1 [shape = 'u32[144,128]{1,0:T(1,128)}', space=vmem, size = 0x12000, scoped, tag = 'internal scratch']
  %s0 = inlined_call_operand.hbm [shape: f32[8,32], index: 0, kind: input, shape index: {}]
  %s1 = inlined_call_operand.hbm [shape: s32[8,32], index: 1, kind: input, shape index: {}]
  %s2 = inlined_call_operand.hbm [shape: f32[8,32], index: 2, kind: output, shape index: {}]
  %s3 = sld [smem:[#allocation0]]
  $region26: #{tpu_custom_call.1} parent=0
    _
  %s5 = ssub.s32 1, %s3
  %s6 = scalar_select 0, %s5, %s3
  $region1: #{tpu_custom_call.1} parent=0
    #allocation2 [shape = 'u8[4096]{0}', space=vmem, size = 0x1000, scoped, tag = 'input window, operand 0, single buffered']
    #allocation3 [shape = 's32[1]{0}', space=sflag, size = 0x4, scoped, tag = 'scoped memory for tpu_custom_call.1']
    #allocation4 [shape = 's32[1]{0}', space=sflag, size = 0x4, scoped, tag = 'scoped memory for tpu_custom_call.1']
    #allocation5 [shape = 'u8[4096]{0}', space=vmem, size = 0x1000, scoped, tag = 'input window, operand 1, single buffered']
    #allocation6 [shape = 's32[1]{0}', space=sflag, size = 0x4, scoped, tag = 'scoped memory for tpu_custom_call.1']
    #allocation7 [shape = 'u8[4096]{0}', space=vmem, size = 0x1000, scoped, tag = 'output window, operand 0, single buffered']
    %7 = vsyncpa [#allocation3], 0
    %8 = vsyncpa [#allocation6], 0
    %9 = vsyncpa [#allocation4], 0
    // Predicated region
    $region2: #{tpu_custom_call.1} parent=1 // pred_check
      _
    $region3: #{tpu_custom_call.1} parent=1 // pred_check_branch
      %11 = sbr.rel (0) target = $region5
    $region4: #{tpu_custom_call.1} parent=1 // pred_region
      %s13 = ssub.s32 128, 128
      %14 = vsyncadd [#allocation3], %s13
      %s16 = sshll.u32 [#allocation2], 4
      %s17 = int_to_ptr.vmem [resolvable:$true] %s16
      %19 = dma.hbm_to_vmem [thread:$0]  %s0, 128, %s17, [#allocation3]
    $region5: #{tpu_custom_call.1} parent=1 // pred_fallthru
      _
    // Predicated region
    $region6: #{tpu_custom_call.1} parent=1 // pred_check
      _
    $region7: #{tpu_custom_call.1} parent=1 // pred_check_branch
      %21 = sbr.rel (0) target = $region9
    $region8: #{tpu_custom_call.1} parent=1 // pred_region
      %s23 = ssub.s32 128, 128
      %24 = vsyncadd [#allocation6], %s23
      %s26 = sshll.u32 [#allocation5], 4
      %s27 = int_to_ptr.vmem [resolvable:$true] %s26
      %29 = dma.hbm_to_vmem [thread:$0]  %s1, 128, %s27, [#allocation6]
    $region9: #{tpu_custom_call.1} parent=1 // pred_fallthru
      _
    // Predicated region
    $region10: #{tpu_custom_call.1} parent=1 // pred_check
      _
    $region11: #{tpu_custom_call.1} parent=1 // pred_check_branch
      %31 = sbr.rel (0) target = $region13
    $region12: #{tpu_custom_call.1} parent=1 // pred_region
      %32 = dma.done [#allocation3], 128
    $region13: #{tpu_custom_call.1} parent=1 // pred_fallthru
      _
    // Predicated region
    $region14: #{tpu_custom_call.1} parent=1 // pred_check
      _
    $region15: #{tpu_custom_call.1} parent=1 // pred_check_branch
      %34 = sbr.rel (0) target = $region17
    $region16: #{tpu_custom_call.1} parent=1 // pred_region
      %35 = dma.done [#allocation6], 128
    $region17: #{tpu_custom_call.1} parent=1 // pred_fallthru
      _
    %v36 = vld [vmem:[#allocation2] sm:$0xff]
    %v37 = vld [vmem:[#allocation5] sm:$0xff]
    %vm38 = vcmp.eq.s32.totalorder %v37, 1
    %v39 = vsel %vm38, %v36, -inf
    %vm40 = vcmask 261120
    %v41 = vsel %vm40, %v39, -inf
    %42 = vmax.xlane.f32.xlu0 %v41
    %v43 = vpop.xlane.xlu0 %42
    %v44 = vsub.f32 %v39, %v43
    %v45 = vmul.f32 %v44, 1.442695
    %v46 = vpow.pop %v45
    %v47 = vsel %vm40, %v46, 0.0
    %48 = vadd.xlane.f32.xlu0 %v47
    %v49 = vpop.xlane.xlu0 %48
    %v50 = vrcp.pop %v49
    %v51 = vmul.f32 %v46, %v50
    %52 = vst.msk [vmem:[#allocation7] sm:$0xff] %vm40, %v51
    // Predicated region
    $region18: #{tpu_custom_call.1} parent=1 // pred_check
      _
    $region19: #{tpu_custom_call.1} parent=1 // pred_check_branch
      %54 = sbr.rel (0) target = $region21
    $region20: #{tpu_custom_call.1} parent=1 // pred_region
      %s56 = ssub.s32 128, 128
      %57 = vsyncadd [#allocation4], %s56
      %s59 = sshll.u32 [#allocation7], 4
      %s60 = int_to_ptr.vmem [resolvable:$true] %s59
      %62 = dma.vmem_to_hbm [thread:$0]  %s60, 128, %s2, [#allocation4]
    $region21: #{tpu_custom_call.1} parent=1 // pred_fallthru
      _
    // Predicated region
    $region22: #{tpu_custom_call.1} parent=1 // pred_check
      _
    $region23: #{tpu_custom_call.1} parent=1 // pred_check_branch
      %64 = sbr.rel (0) target = $region25
    $region24: #{tpu_custom_call.1} parent=1 // pred_region
      %65 = dma.done [#allocation4], 128
    $region25: #{tpu_custom_call.1} parent=1 // pred_fallthru
      _
    %66 = vsyncpa [#allocation3], 1
    %67 = vsyncpa [#allocation6], 1
    %68 = vsyncpa [#allocation4], 1

</llo_original>
